<compile_context>
chip_gen: v7x
topology: tpu7x:2x2x1
jax: 0.10.0
libtpu: 0.0.40
codegen_flags: <defaults>
</compile_context>

<pallas_src>
import jax
import jax.numpy as jnp
import numpy as np
from jax.experimental import pallas as pl
from jax.experimental.pallas import tpu as pltpu

# -------- static problem sizes (small, consistent with the module) ----------
B = 2        # batch
N = 16       # n_nodes (indices.size(0))
C = 16       # in_channels
S = 9        # seq_length (indices.size(1))
O = 32       # out_channels

NC = N * C   # 256  (flattened node*channel axis -> lanes)
NO = N * O   # 512  (flattened node*out_channel axis -> lanes)


# ----------------------------- Pallas kernel --------------------------------
def _adaptive_spiral_kernel(x_ref, w_ref, bias_ref, o_ref):
    f32 = jnp.float32
    x = x_ref[...]                                    # (B, N*C)
    bg = bias_ref[:, :NC]                             # (1, N*C)  gate bias (tiled)
    bsc = bias_ref[:, NC:]                            # (1, N*O)  SpiralConv bias (tiled)

    # gate = Linear(C, C)(x)  -- per-node Linear folded into block-diag weight.
    gate = jnp.dot(x, w_ref[:, :NC], preferred_element_type=f32) + bg
    # dw = einsum('bvsf,vs->bvf', x[:, indices], w_dw), with beta pre-folded.
    dw = jnp.dot(x, w_ref[:, NC:2 * NC], preferred_element_type=f32)
    # x = beta * (dw * gate) + x
    x2 = dw * gate + x
    # SpiralConv: index_select over indices + Linear(C*S -> O), fused into
    # one (B, N*C) x (N*C, N*O) matmul.
    o_ref[...] = jnp.dot(x2, w_ref[:, 2 * NC:], preferred_element_type=f32) + bsc


# ------------------------------- wrapper -------------------------------------
def adaptive_spiral_conv(x, folded):
    x_flat = x.reshape(B, NC)
    args = (x_flat, folded['w_pack'], folded['bias_pack'])

    out_flat = pl.pallas_call(
        _adaptive_spiral_kernel,
        out_shape=jax.ShapeDtypeStruct((B, NO), jnp.float32),
        grid_spec=pltpu.PrefetchScalarGridSpec(
            num_scalar_prefetch=0,
            grid=(1,),                                       # single step: whole problem in VMEM
            in_specs=[pl.BlockSpec(a.shape, lambda i: (0, 0)) for a in args],
            out_specs=pl.BlockSpec((B, NO), lambda i: (0, 0)),
        ),
        compiler_params=pltpu.CompilerParams(
            dimension_semantics=("arbitrary",)),
    )(*args)
    return out_flat.reshape(B, N, O)


# -------------------- deterministic parameter construction -------------------
def build_params(key, indices):
    ks = jax.random.split(key, 5)
    f32 = jnp.float32
    raw = dict(
        w_gate=jax.random.normal(ks[0], (C, C), f32) * 0.2,     # gate Linear weight
        b_gate=jax.random.normal(ks[1], (C,), f32) * 0.05,      # gate Linear bias
        w_dw=jax.random.normal(ks[2], (N, S), f32) * 0.3,       # Gated_spiral_dw.weight
        w_sc=jax.random.normal(ks[3], (O, C * S), f32) * 0.1,   # SpiralConv weight
        b_sc=jax.random.normal(ks[4], (O,), f32) * 0.05,        # SpiralConv bias
        beta=jnp.ones((1,), f32),                               # beta parameter
    )

    onehot = jax.nn.one_hot(indices, N, dtype=f32)              # (N, S, N): [v, s, n]

    # A[v, n] = sum_s w_dw[v, s] * [indices[v, s] == n]
    a_mat = jnp.einsum('vs,vsn->vn', raw['w_dw'], onehot)       # (N, N)
    a_bd = jnp.kron((raw['beta'][0] * a_mat).T,
                    jnp.eye(C, dtype=f32))                      # (N*C, N*C)
    # per-node gate Linear as block-diagonal weight
    wg_bd = jnp.kron(jnp.eye(N, dtype=f32), raw['w_gate'].T)    # (N*C, N*C)
    # fused SpiralConv gather + Linear
    w_sr = raw['w_sc'].reshape(O, S, C)                         # [o, s, c]
    w_eff = jnp.einsum('vsn,osc->ncvo', onehot, w_sr).reshape(NC, NO)

    w_pack = jnp.concatenate([wg_bd, a_bd, w_eff], axis=1)      # (256, 1024)
    bias_pack = jnp.concatenate(
        [jnp.tile(raw['b_gate'], N), jnp.tile(raw['b_sc'], N)]
    ).reshape(1, NC + NO)                                       # (1, 768)

    folded = dict(w_pack=w_pack, bias_pack=bias_pack)
    return raw, folded


# ------------------------ plain-JAX reference (PyTorch semantics) ------------
def reference(x, rp, indices):
    bs = x.shape[0]
    # Gated_spiral_dw
    gate = x @ rp['w_gate'].T + rp['b_gate']
    _x = x[:, indices.reshape(-1), :].reshape(bs, N, S, C)
    dw = jnp.einsum('bvsf,vs->bvf', _x, rp['w_dw'])
    x = rp['beta'] * (dw * gate) + x
    # SpiralConv: gather + Linear(C*S -> O)
    xs = x[:, indices.reshape(-1), :].reshape(bs, N, S * C)
    return xs @ rp['w_sc'].T + rp['b_sc']


# --------------------------------- main ---------------------------------------
if __name__ == "__main__":
    key = jax.random.PRNGKey(0)
    kx, ki, kp = jax.random.split(key, 3)
    x = jax.random.normal(kx, (B, N, C), jnp.float32)
    indices = jax.random.randint(ki, (N, S), 0, N)

    raw, folded = build_params(kp, indices)

    out = adaptive_spiral_conv(x, folded)
    out = jax.block_until_ready(out)

    ref = reference(x, raw, indices)
    assert out.shape == (B, N, O)
    np.testing.assert_allclose(np.asarray(out), np.asarray(ref),
                               rtol=2e-3, atol=2e-3)
    print("KERNEL_OK")
</pallas_src>

<mosaic_0001>
module attributes {stable_mosaic.version = 11 : i64} {
  func.func @_adaptive_spiral_kernel(%arg0: i32, %arg1: memref<2x256xf32, #tpu.memory_space<vmem>>, %arg2: memref<256x1024xf32, #tpu.memory_space<vmem>>, %arg3: memref<1x768xf32, #tpu.memory_space<vmem>>, %arg4: memref<2x512xf32, #tpu.memory_space<vmem>>) attributes {dimension_semantics = [#tpu.dimension_semantics<arbitrary>], iteration_bounds = array<i64: 1>, scalar_prefetch = 0 : i64, scratch_operands = 0 : i64, tpu.core_type = #tpu.core_type<tc>, window_params = [{pipeline_mode = #tpu.pipeline_mode<synchronous>, transform_indices = @transform_0, window_bounds = array<i64: 2, 256>}, {pipeline_mode = #tpu.pipeline_mode<synchronous>, transform_indices = @transform_1, window_bounds = array<i64: 256, 1024>}, {pipeline_mode = #tpu.pipeline_mode<synchronous>, transform_indices = @transform_2, window_bounds = array<i64: 1, 768>}, {pipeline_mode = #tpu.pipeline_mode<synchronous>, transform_indices = @transform_3, window_bounds = array<i64: 2, 512>}]} {
    %c0 = arith.constant 0 : index
    %c0_0 = arith.constant 0 : index
    %0 = vector.load %arg1[%c0, %c0_0] : memref<2x256xf32, #tpu.memory_space<vmem>>, vector<2x256xf32>
    %c0_1 = arith.constant 0 : index
    %c0_2 = arith.constant 0 : index
    %1 = vector.load %arg3[%c0_1, %c0_2] : memref<1x768xf32, #tpu.memory_space<vmem>>, vector<1x256xf32>
    %c0_3 = arith.constant 0 : index
    %c256 = arith.constant 256 : index
    %2 = vector.load %arg3[%c0_3, %c256] : memref<1x768xf32, #tpu.memory_space<vmem>>, vector<1x512xf32>
    %c0_4 = arith.constant 0 : index
    %c0_5 = arith.constant 0 : index
    %3 = vector.load %arg2[%c0_4, %c0_5] : memref<256x1024xf32, #tpu.memory_space<vmem>>, vector<256x256xf32>
    %cst = arith.constant dense<0.000000e+00> : vector<2x256xf32>
    %4 = tpu.matmul %0, %3, %cst {dimension_numbers = #tpu.dot_dimension_numbers<[1], [0], [0], [1], [0, 0, 1, 1], [], []>} : vector<2x256xf32>, vector<256x256xf32>, vector<2x256xf32> -> vector<2x256xf32>
    %5 = vector.broadcast %1 : vector<1x256xf32> to vector<2x256xf32>
    %6 = arith.addf %4, %5 : vector<2x256xf32>
    %c0_6 = arith.constant 0 : index
    %c256_7 = arith.constant 256 : index
    %7 = vector.load %arg2[%c0_6, %c256_7] : memref<256x1024xf32, #tpu.memory_space<vmem>>, vector<256x256xf32>
    %cst_8 = arith.constant dense<0.000000e+00> : vector<2x256xf32>
    %8 = tpu.matmul %0, %7, %cst_8 {dimension_numbers = #tpu.dot_dimension_numbers<[1], [0], [0], [1], [0, 0, 1, 1], [], []>} : vector<2x256xf32>, vector<256x256xf32>, vector<2x256xf32> -> vector<2x256xf32>
    %9 = arith.mulf %8, %6 : vector<2x256xf32>
    %10 = arith.addf %9, %0 : vector<2x256xf32>
    %c0_9 = arith.constant 0 : index
    %c512 = arith.constant 512 : index
    %11 = vector.load %arg2[%c0_9, %c512] : memref<256x1024xf32, #tpu.memory_space<vmem>>, vector<256x512xf32>
    %cst_10 = arith.constant dense<0.000000e+00> : vector<2x512xf32>
    %12 = tpu.matmul %10, %11, %cst_10 {dimension_numbers = #tpu.dot_dimension_numbers<[1], [0], [0], [1], [0, 0, 1, 1], [], []>} : vector<2x256xf32>, vector<256x512xf32>, vector<2x512xf32> -> vector<2x512xf32>
    %13 = vector.broadcast %2 : vector<1x512xf32> to vector<2x512xf32>
    %14 = arith.addf %12, %13 : vector<2x512xf32>
    %c0_11 = arith.constant 0 : index
    %c0_12 = arith.constant 0 : index
    %15 = vector.load %arg4[%c0_11, %c0_12] : memref<2x512xf32, #tpu.memory_space<vmem>>, vector<2x512xf32>
    tpu.vector_store %arg4[%c0_11, %c0_12], %14 {strides = array<i32>} : memref<2x512xf32, #tpu.memory_space<vmem>>, vector<2x512xf32>,
    return
  }
  func.func @transform_0(%arg0: i32) -> (i32, i32) {
    %c0_i32 = arith.constant 0 : i32
    %c0_i32_0 = arith.constant 0 : i32
    %c0_i32_1 = arith.constant 0 : i32
    return %c0_i32, %c0_i32_0 : i32, i32
  }
  func.func @transform_1(%arg0: i32) -> (i32, i32) {
    %c0_i32 = arith.constant 0 : i32
    %c0_i32_0 = arith.constant 0 : i32
    %c0_i32_1 = arith.constant 0 : i32
    return %c0_i32, %c0_i32_0 : i32, i32
  }
  func.func @transform_2(%arg0: i32) -> (i32, i32) {
    %c0_i32 = arith.constant 0 : i32
    %c0_i32_0 = arith.constant 0 : i32
    %c0_i32_1 = arith.constant 0 : i32
    return %c0_i32, %c0_i32_0 : i32, i32
  }
  func.func @transform_3(%arg0: i32) -> (i32, i32) {
    %c0_i32 = arith.constant 0 : i32
    %c0_i32_0 = arith.constant 0 : i32
    %c0_i32_1 = arith.constant 0 : i32
    return %c0_i32, %c0_i32_0 : i32, i32
  }
}

</mosaic_0001>

<llo_original>
// kernel: tpu_custom_call.1
$region0: #{tpu_custom_call.1}
  #allocation0 [shape = 'u32[]', space=smem, size = 0x4, offset = 0x4, fixed_abs, tag = 'smem constant byte address 0x4 - core index']
  #allocation1 [shape = 'u32[144,128]{1,0:T(1,128)}', space=vmem, size = 0x12000, scoped, tag = 'internal scratch']
  %s0 = inlined_call_operand.hbm [shape: f32[2,256], index: 0, kind: input, shape index: {}]
  %s1 = inlined_call_operand.hbm [shape: f32[256,1024], index: 1, kind: input, shape index: {}]
  %s2 = inlined_call_operand.vmem [shape: f32[1,768], index: 2, kind: input, shape index: {}]
  %s3 = inlined_call_operand.hbm [shape: f32[2,512], index: 3, kind: output, shape index: {}]
  %s4 = sld [smem:[#allocation0]]
  $region30: #{tpu_custom_call.1} parent=0
    _
  %s6 = ssub.s32 1, %s4
  %s7 = scalar_select 0, %s6, %s4
  $region1: #{tpu_custom_call.1} parent=0
    #allocation2 [shape = 'u8[2048]{0}', space=vmem, size = 0x800, scoped, tag = 'input window, operand 0, single buffered']
    #allocation3 [shape = 's32[1]{0}', space=sflag, size = 0x4, scoped, tag = 'scoped memory for tpu_custom_call.1']
    #allocation4 [shape = 's32[1]{0}', space=sflag, size = 0x4, scoped, tag = 'scoped memory for tpu_custom_call.1']
    #allocation5 [shape = 'u8[1048576]{0}', space=vmem, size = 0x100000, scoped, tag = 'input window, operand 1, single buffered']
    #allocation6 [shape = 's32[1]{0}', space=sflag, size = 0x4, scoped, tag = 'scoped memory for tpu_custom_call.1']
    #allocation7 [shape = 'u8[4096]{0}', space=vmem, size = 0x1000, scoped, tag = 'output window, operand 0, single buffered']
    %8 = vsyncpa [#allocation3], 0
    %9 = vsyncpa [#allocation6], 0
    %10 = vsyncpa [#allocation4], 0
    // Predicated region
    $region2: #{tpu_custom_call.1} parent=1 // pred_check
      _
    $region3: #{tpu_custom_call.1} parent=1 // pred_check_branch
      %12 = sbr.rel (0) target = $region5
    $region4: #{tpu_custom_call.1} parent=1 // pred_region
      %s14 = ssub.s32 64, 64
      %15 = vsyncadd [#allocation3], %s14
      %s17 = sshll.u32 [#allocation2], 4
      %s18 = int_to_ptr.vmem [resolvable:$true] %s17
      %20 = dma.hbm_to_vmem [thread:$0]  %s0, 64, %s18, [#allocation3]
    $region5: #{tpu_custom_call.1} parent=1 // pred_fallthru
      _
    // Predicated region
    $region6: #{tpu_custom_call.1} parent=1 // pred_check
      _
    $region7: #{tpu_custom_call.1} parent=1 // pred_check_branch
      %22 = sbr.rel (0) target = $region9
    $region8: #{tpu_custom_call.1} parent=1 // pred_region
      %s24 = ssub.s32 32768, 32768
      %25 = vsyncadd [#allocation6], %s24
      %s26 = sshll.u32 [#allocation5], 4
      %s27 = int_to_ptr.vmem [resolvable:$true] %s26
      %32 = dma.hbm_to_vmem [thread:$0]  %s1, 32768, %s27, [#allocation6], 1024, 1024, 64
    $region9: #{tpu_custom_call.1} parent=1 // pred_fallthru
      _
    // Predicated region
    $region10: #{tpu_custom_call.1} parent=1 // pred_check
      _
    $region11: #{tpu_custom_call.1} parent=1 // pred_check_branch
      %34 = sbr.rel (0) target = $region13
    $region12: #{tpu_custom_call.1} parent=1 // pred_region
      _
    $region13: #{tpu_custom_call.1} parent=1 // pred_fallthru
      _
    // Predicated region
    $region14: #{tpu_custom_call.1} parent=1 // pred_check
      _
    $region15: #{tpu_custom_call.1} parent=1 // pred_check_branch
      %36 = sbr.rel (0) target = $region17
    $region16: #{tpu_custom_call.1} parent=1 // pred_region
      %37 = dma.done [#allocation3], 64
    $region17: #{tpu_custom_call.1} parent=1 // pred_fallthru
      _
    // Predicated region
    $region18: #{tpu_custom_call.1} parent=1 // pred_check
      _
    $region19: #{tpu_custom_call.1} parent=1 // pred_check_branch
      %39 = sbr.rel (0) target = $region21
    $region20: #{tpu_custom_call.1} parent=1 // pred_region
      %40 = dma.done [#allocation6], 32768
    $region21: #{tpu_custom_call.1} parent=1 // pred_fallthru
      _
    %v41 = vld [vmem:[#allocation2] sm:$0xf]
    %v42 = vld [vmem:[%s2] sm:$0x3]
    %v43 = vld [vmem:[%s2 + $0x2] sm:$0xf]
    %v44 = vld [vmem:[#allocation5] sm:$0xff]
    %v45 = vld [vmem:[#allocation5 + $0x8] sm:$0xff]
    %v46 = vld [vmem:[#allocation5 + $0x40] sm:$0xff]
    %v47 = vld [vmem:[#allocation5 + $0x48] sm:$0xff]
    %v48 = vld [vmem:[#allocation5 + $0x80] sm:$0xff]
    %v49 = vld [vmem:[#allocation5 + $0x88] sm:$0xff]
    %v50 = vld [vmem:[#allocation5 + $0xc0] sm:$0xff]
    %v51 = vld [vmem:[#allocation5 + $0xc8] sm:$0xff]
    %v52 = vld [vmem:[#allocation5 + $0x100] sm:$0xff]
    %v53 = vld [vmem:[#allocation5 + $0x108] sm:$0xff]
    %v54 = vld [vmem:[#allocation5 + $0x140] sm:$0xff]
    %v55 = vld [vmem:[#allocation5 + $0x148] sm:$0xff]
    %v56 = vld [vmem:[#allocation5 + $0x180] sm:$0xff]
    %v57 = vld [vmem:[#allocation5 + $0x188] sm:$0xff]
    %v58 = vld [vmem:[#allocation5 + $0x1c0] sm:$0xff]
    %v59 = vld [vmem:[#allocation5 + $0x1c8] sm:$0xff]
    %v60 = vld [vmem:[#allocation5 + $0x200] sm:$0xff]
    %v61 = vld [vmem:[#allocation5 + $0x208] sm:$0xff]
    %v62 = vld [vmem:[#allocation5 + $0x240] sm:$0xff]
    %v63 = vld [vmem:[#allocation5 + $0x248] sm:$0xff]
    %v64 = vld [vmem:[#allocation5 + $0x280] sm:$0xff]
    %v65 = vld [vmem:[#allocation5 + $0x288] sm:$0xff]
    %v66 = vld [vmem:[#allocation5 + $0x2c0] sm:$0xff]
    %v67 = vld [vmem:[#allocation5 + $0x2c8] sm:$0xff]
    %v68 = vld [vmem:[#allocation5 + $0x300] sm:$0xff]
    %v69 = vld [vmem:[#allocation5 + $0x308] sm:$0xff]
    %v70 = vld [vmem:[#allocation5 + $0x340] sm:$0xff]
    %v71 = vld [vmem:[#allocation5 + $0x348] sm:$0xff]
    %v72 = vld [vmem:[#allocation5 + $0x380] sm:$0xff]
    %v73 = vld [vmem:[#allocation5 + $0x388] sm:$0xff]
    %v74 = vld [vmem:[#allocation5 + $0x3c0] sm:$0xff]
    %v75 = vld [vmem:[#allocation5 + $0x3c8] sm:$0xff]
    %v76 = vld [vmem:[#allocation5 + $0x400] sm:$0xff]
    %v77 = vld [vmem:[#allocation5 + $0x408] sm:$0xff]
    %v78 = vld [vmem:[#allocation5 + $0x440] sm:$0xff]
    %v79 = vld [vmem:[#allocation5 + $0x448] sm:$0xff]
    %v80 = vld [vmem:[#allocation5 + $0x480] sm:$0xff]
    %v81 = vld [vmem:[#allocation5 + $0x488] sm:$0xff]
    %v82 = vld [vmem:[#allocation5 + $0x4c0] sm:$0xff]
    %v83 = vld [vmem:[#allocation5 + $0x4c8] sm:$0xff]
    %v84 = vld [vmem:[#allocation5 + $0x500] sm:$0xff]
    %v85 = vld [vmem:[#allocation5 + $0x508] sm:$0xff]
    %v86 = vld [vmem:[#allocation5 + $0x540] sm:$0xff]
    %v87 = vld [vmem:[#allocation5 + $0x548] sm:$0xff]
    %v88 = vld [vmem:[#allocation5 + $0x580] sm:$0xff]
    %v89 = vld [vmem:[#allocation5 + $0x588] sm:$0xff]
    %v90 = vld [vmem:[#allocation5 + $0x5c0] sm:$0xff]
    %v91 = vld [vmem:[#allocation5 + $0x5c8] sm:$0xff]
    %v92 = vld [vmem:[#allocation5 + $0x600] sm:$0xff]
    %v93 = vld [vmem:[#allocation5 + $0x608] sm:$0xff]
    %v94 = vld [vmem:[#allocation5 + $0x640] sm:$0xff]
    %v95 = vld [vmem:[#allocation5 + $0x648] sm:$0xff]
    %v96 = vld [vmem:[#allocation5 + $0x680] sm:$0xff]
    %v97 = vld [vmem:[#allocation5 + $0x688] sm:$0xff]
    %v98 = vld [vmem:[#allocation5 + $0x6c0] sm:$0xff]
    %v99 = vld [vmem:[#allocation5 + $0x6c8] sm:$0xff]
    %v100 = vld [vmem:[#allocation5 + $0x700] sm:$0xff]
    %v101 = vld [vmem:[#allocation5 + $0x708] sm:$0xff]
    %v102 = vld [vmem:[#allocation5 + $0x740] sm:$0xff]
    %v103 = vld [vmem:[#allocation5 + $0x748] sm:$0xff]
    %v104 = vld [vmem:[#allocation5 + $0x780] sm:$0xff]
    %v105 = vld [vmem:[#allocation5 + $0x788] sm:$0xff]
    %v106 = vld [vmem:[#allocation5 + $0x7c0] sm:$0xff]
    %v107 = vld [vmem:[#allocation5 + $0x7c8] sm:$0xff]
    %v109 = vlaneseq
    %v110 = vshrl.u32 %v109, 7
    %v111 = vsub.s32 0, %v110
    %v112 = vrot.slane %v42, %v111
    %v113 = vlaneseq
    %v114 = vshrl.u32 %v113, 7
    %v115 = vsub.s32 1, %v114
    %v116 = vrot.slane %v42, %v115
    %v121 = vunpack.c.l.s4 1983009808
    %v122 = vunpack.c.0.s8 %v121
    %v123 = vlaneseq
    %v124 = vshrl.u32 %v123, 7
    %v125 = vsub.s32 %v122, %v124
    %v126 = vrot.slane %v41, %v125
    %v127 = vcombine.high %v126, %v126
    %130 = vmatprep.subr.mxu0 %v45
    %131 = vmatpush1.msra.mxu0 %v44
    %132 = vmatprep.subr.mxu0 %v47
    %133 = vmatpush1.msra.mxu0 %v46
    %134 = vmatprep.subr.mxu0 %v49
    %135 = vmatpush1.msra.mxu0 %v48
    %136 = vmatprep.subr.mxu0 %v51
    %137 = vmatpush1.msra.mxu0 %v50
    %138 = vmatprep.subr.mxu0 %v53
    %139 = vmatpush1.msra.mxu0 %v52
    %140 = vmatprep.subr.mxu0 %v55
    %141 = vmatpush1.msra.mxu0 %v54
    %142 = vmatprep.subr.mxu0 %v57
    %143 = vmatpush1.msra.mxu0 %v56
    %144 = vmatprep.subr.mxu0 %v59
    %145 = vmatpush1.msra.mxu0 %v58
    %146 = vmatprep.subr.mxu0 %v61
    %147 = vmatpush1.msra.mxu0 %v60
    %148 = vmatprep.subr.mxu0 %v63
    %149 = vmatpush1.msra.mxu0 %v62
    %150 = vmatprep.subr.mxu0 %v65
    %151 = vmatpush1.msra.mxu0 %v64
    %152 = vmatprep.subr.mxu0 %v67
    %153 = vmatpush1.msra.mxu0 %v66
    %154 = vmatprep.subr.mxu0 %v69
    %155 = vmatpush1.msra.mxu0 %v68
    %156 = vmatprep.subr.mxu0 %v71
    %157 = vmatpush1.msra.mxu0 %v70
    %158 = vmatprep.subr.mxu0 %v73
    %159 = vmatpush1.msra.mxu0 %v72
    %160 = vmatprep.subr.mxu0 %v75
    %161 = vmatpush1.msra.mxu0 %v74
    %162 = vmatprep.subr.mxu0 %v77
    %163 = vmatpush1.msra.mxu0 %v76
    %164 = vmatprep.subr.mxu0 %v79
    %165 = vmatpush1.msra.mxu0 %v78
    %166 = vmatprep.subr.mxu0 %v81
    %167 = vmatpush1.msra.mxu0 %v80
    %168 = vmatprep.subr.mxu0 %v83
    %169 = vmatpush1.msra.mxu0 %v82
    %170 = vmatprep.subr.mxu0 %v85
    %171 = vmatpush1.msra.mxu0 %v84
    %172 = vmatprep.subr.mxu0 %v87
    %173 = vmatpush1.msra.mxu0 %v86
    %174 = vmatprep.subr.mxu0 %v89
    %175 = vmatpush1.msra.mxu0 %v88
    %176 = vmatprep.subr.mxu0 %v91
    %177 = vmatpush1.msra.mxu0 %v90
    %178 = vmatprep.subr.mxu0 %v93
    %179 = vmatpush1.msra.mxu0 %v92
    %180 = vmatprep.subr.mxu0 %v95
    %181 = vmatpush1.msra.mxu0 %v94
    %182 = vmatprep.subr.mxu0 %v97
    %183 = vmatpush1.msra.mxu0 %v96
    %184 = vmatprep.subr.mxu0 %v99
    %185 = vmatpush1.msra.mxu0 %v98
    %186 = vmatprep.subr.mxu0 %v101
    %187 = vmatpush1.msra.mxu0 %v100
    %188 = vmatprep.subr.mxu0 %v103
    %189 = vmatpush1.msra.mxu0 %v102
    %190 = vmatprep.subr.mxu0 %v105
    %191 = vmatpush1.msra.mxu0 %v104
    %192 = vmatprep.subr.mxu0 %v107
    %193 = vmatpush1.msra.mxu0 %v106
    %194 = vmatprep.mubr.f32.mxu0 %v127
    %195 = vmatmul.mubr.f32.gmra.mrb[0].mxu0 %v126
    %v196 = vpop.f32.mrb[0].mxu0
    %v197 = vadd.f32 %v112, %v196
    %v198 = vpop.f32.mrb[0].mxu0
    %v199 = vadd.f32 %v116, %v198
    %200 = vdwg.mxu0
    %v201 = vld [vmem:[#allocation5 + $0x10] sm:$0xff]
    %v202 = vld [vmem:[#allocation5 + $0x18] sm:$0xff]
    %v203 = vld [vmem:[#allocation5 + $0x50] sm:$0xff]
    %v204 = vld [vmem:[#allocation5 + $0x58] sm:$0xff]
    %v205 = vld [vmem:[#allocation5 + $0x90] sm:$0xff]
    %v206 = vld [vmem:[#allocation5 + $0x98] sm:$0xff]
    %v207 = vld [vmem:[#allocation5 + $0xd0] sm:$0xff]
    %v208 = vld [vmem:[#allocation5 + $0xd8] sm:$0xff]
    %v209 = vld [vmem:[#allocation5 + $0x110] sm:$0xff]
    %v210 = vld [vmem:[#allocation5 + $0x118] sm:$0xff]
    %v211 = vld [vmem:[#allocation5 + $0x150] sm:$0xff]
    %v212 = vld [vmem:[#allocation5 + $0x158] sm:$0xff]
    %v213 = vld [vmem:[#allocation5 + $0x190] sm:$0xff]
    %v214 = vld [vmem:[#allocation5 + $0x198] sm:$0xff]
    %v215 = vld [vmem:[#allocation5 + $0x1d0] sm:$0xff]
    %v216 = vld [vmem:[#allocation5 + $0x1d8] sm:$0xff]
    %v217 = vld [vmem:[#allocation5 + $0x210] sm:$0xff]
    %v218 = vld [vmem:[#allocation5 + $0x218] sm:$0xff]
    %v219 = vld [vmem:[#allocation5 + $0x250] sm:$0xff]
    %v220 = vld [vmem:[#allocation5 + $0x258] sm:$0xff]
    %v221 = vld [vmem:[#allocation5 + $0x290] sm:$0xff]
    %v222 = vld [vmem:[#allocation5 + $0x298] sm:$0xff]
    %v223 = vld [vmem:[#allocation5 + $0x2d0] sm:$0xff]
    %v224 = vld [vmem:[#allocation5 + $0x2d8] sm:$0xff]
    %v225 = vld [vmem:[#allocation5 + $0x310] sm:$0xff]
    %v226 = vld [vmem:[#allocation5 + $0x318] sm:$0xff]
    %v227 = vld [vmem:[#allocation5 + $0x350] sm:$0xff]
    %v228 = vld [vmem:[#allocation5 + $0x358] sm:$0xff]
    %v229 = vld [vmem:[#allocation5 + $0x390] sm:$0xff]
    %v230 = vld [vmem:[#allocation5 + $0x398] sm:$0xff]
    %v231 = vld [vmem:[#allocation5 + $0x3d0] sm:$0xff]
    %v232 = vld [vmem:[#allocation5 + $0x3d8] sm:$0xff]
    %v233 = vld [vmem:[#allocation5 + $0x410] sm:$0xff]
    %v234 = vld [vmem:[#allocation5 + $0x418] sm:$0xff]
    %v235 = vld [vmem:[#allocation5 + $0x450] sm:$0xff]
    %v236 = vld [vmem:[#allocation5 + $0x458] sm:$0xff]
    %v237 = vld [vmem:[#allocation5 + $0x490] sm:$0xff]
    %v238 = vld [vmem:[#allocation5 + $0x498] sm:$0xff]
    %v239 = vld [vmem:[#allocation5 + $0x4d0] sm:$0xff]
    %v240 = vld [vmem:[#allocation5 + $0x4d8] sm:$0xff]
    %v241 = vld [vmem:[#allocation5 + $0x510] sm:$0xff]
    %v242 = vld [vmem:[#allocation5 + $0x518] sm:$0xff]
    %v243 = vld [vmem:[#allocation5 + $0x550] sm:$0xff]
    %v244 = vld [vmem:[#allocation5 + $0x558] sm:$0xff]
    %v245 = vld [vmem:[#allocation5 + $0x590] sm:$0xff]
    %v246 = vld [vmem:[#allocation5 + $0x598] sm:$0xff]
    %v247 = vld [vmem:[#allocation5 + $0x5d0] sm:$0xff]
    %v248 = vld [vmem:[#allocation5 + $0x5d8] sm:$0xff]
    %v249 = vld [vmem:[#allocation5 + $0x610] sm:$0xff]
    %v250 = vld [vmem:[#allocation5 + $0x618] sm:$0xff]
    %v251 = vld [vmem:[#allocation5 + $0x650] sm:$0xff]
    %v252 = vld [vmem:[#allocation5 + $0x658] sm:$0xff]
    %v253 = vld [vmem:[#allocation5 + $0x690] sm:$0xff]
    %v254 = vld [vmem:[#allocation5 + $0x698] sm:$0xff]
    %v255 = vld [vmem:[#allocation5 + $0x6d0] sm:$0xff]
    %v256 = vld [vmem:[#allocation5 + $0x6d8] sm:$0xff]
    %v257 = vld [vmem:[#allocation5 + $0x710] sm:$0xff]
    %v258 = vld [vmem:[#allocation5 + $0x718] sm:$0xff]
    %v259 = vld [vmem:[#allocation5 + $0x750] sm:$0xff]
    %v260 = vld [vmem:[#allocation5 + $0x758] sm:$0xff]
    %v261 = vld [vmem:[#allocation5 + $0x790] sm:$0xff]
    %v262 = vld [vmem:[#allocation5 + $0x798] sm:$0xff]
    %v263 = vld [vmem:[#allocation5 + $0x7d0] sm:$0xff]
    %v264 = vld [vmem:[#allocation5 + $0x7d8] sm:$0xff]
    %265 = vmatprep.subr.mxu0 %v202
    %266 = vmatpush1.msra.mxu0 %v201
    %267 = vmatprep.subr.mxu0 %v204
    %268 = vmatpush1.msra.mxu0 %v203
    %269 = vmatprep.subr.mxu0 %v206
    %270 = vmatpush1.msra.mxu0 %v205
    %271 = vmatprep.subr.mxu0 %v208
    %272 = vmatpush1.msra.mxu0 %v207
    %273 = vmatprep.subr.mxu0 %v210
    %274 = vmatpush1.msra.mxu0 %v209
    %275 = vmatprep.subr.mxu0 %v212
    %276 = vmatpush1.msra.mxu0 %v211
    %277 = vmatprep.subr.mxu0 %v214
    %278 = vmatpush1.msra.mxu0 %v213
    %279 = vmatprep.subr.mxu0 %v216
    %280 = vmatpush1.msra.mxu0 %v215
    %281 = vmatprep.subr.mxu0 %v218
    %282 = vmatpush1.msra.mxu0 %v217
    %283 = vmatprep.subr.mxu0 %v220
    %284 = vmatpush1.msra.mxu0 %v219
    %285 = vmatprep.subr.mxu0 %v222
    %286 = vmatpush1.msra.mxu0 %v221
    %287 = vmatprep.subr.mxu0 %v224
    %288 = vmatpush1.msra.mxu0 %v223
    %289 = vmatprep.subr.mxu0 %v226
    %290 = vmatpush1.msra.mxu0 %v225
    %291 = vmatprep.subr.mxu0 %v228
    %292 = vmatpush1.msra.mxu0 %v227
    %293 = vmatprep.subr.mxu0 %v230
    %294 = vmatpush1.msra.mxu0 %v229
    %295 = vmatprep.subr.mxu0 %v232
    %296 = vmatpush1.msra.mxu0 %v231
    %297 = vmatprep.subr.mxu0 %v234
    %298 = vmatpush1.msra.mxu0 %v233
    %299 = vmatprep.subr.mxu0 %v236
    %300 = vmatpush1.msra.mxu0 %v235
    %301 = vmatprep.subr.mxu0 %v238
    %302 = vmatpush1.msra.mxu0 %v237
    %303 = vmatprep.subr.mxu0 %v240
    %304 = vmatpush1.msra.mxu0 %v239
    %305 = vmatprep.subr.mxu0 %v242
    %306 = vmatpush1.msra.mxu0 %v241
    %307 = vmatprep.subr.mxu0 %v244
    %308 = vmatpush1.msra.mxu0 %v243
    %309 = vmatprep.subr.mxu0 %v246
    %310 = vmatpush1.msra.mxu0 %v245
    %311 = vmatprep.subr.mxu0 %v248
    %312 = vmatpush1.msra.mxu0 %v247
    %313 = vmatprep.subr.mxu0 %v250
    %314 = vmatpush1.msra.mxu0 %v249
    %315 = vmatprep.subr.mxu0 %v252
    %316 = vmatpush1.msra.mxu0 %v251
    %317 = vmatprep.subr.mxu0 %v254
    %318 = vmatpush1.msra.mxu0 %v253
    %319 = vmatprep.subr.mxu0 %v256
    %320 = vmatpush1.msra.mxu0 %v255
    %321 = vmatprep.subr.mxu0 %v258
    %322 = vmatpush1.msra.mxu0 %v257
    %323 = vmatprep.subr.mxu0 %v260
    %324 = vmatpush1.msra.mxu0 %v259
    %325 = vmatprep.subr.mxu0 %v262
    %326 = vmatpush1.msra.mxu0 %v261
    %327 = vmatprep.subr.mxu0 %v264
    %328 = vmatpush1.msra.mxu0 %v263
    %329 = vmatprep.mubr.f32.mxu0 %v127
    %330 = vmatmul.mubr.f32.gmra.mrb[0].mxu0 %v126
    %v331 = vpop.f32.mrb[0].mxu0
    %v332 = vadd.f32 0.0, %v331
    %v333 = vpop.f32.mrb[0].mxu0
    %v334 = vadd.f32 0.0, %v333
    %335 = vdwg.mxu0
    %v336 = vmul.f32 %v332, %v197
    %v337 = vmul.f32 %v334, %v199
    %v338 = vadd.f32 %v336, %v126
    %v339 = vadd.f32 %v337, %v127
    %v340 = vld [vmem:[#allocation5 + $0x20] sm:$0xff]
    %v341 = vld [vmem:[#allocation5 + $0x28] sm:$0xff]
    %v342 = vld [vmem:[#allocation5 + $0x30] sm:$0xff]
    %v343 = vld [vmem:[#allocation5 + $0x38] sm:$0xff]
    %v344 = vld [vmem:[#allocation5 + $0x60] sm:$0xff]
    %v345 = vld [vmem:[#allocation5 + $0x68] sm:$0xff]
    %v346 = vld [vmem:[#allocation5 + $0x70] sm:$0xff]
    %v347 = vld [vmem:[#allocation5 + $0x78] sm:$0xff]
    %v348 = vld [vmem:[#allocation5 + $0xa0] sm:$0xff]
    %v349 = vld [vmem:[#allocation5 + $0xa8] sm:$0xff]
    %v350 = vld [vmem:[#allocation5 + $0xb0] sm:$0xff]
    %v351 = vld [vmem:[#allocation5 + $0xb8] sm:$0xff]
    %v352 = vld [vmem:[#allocation5 + $0xe0] sm:$0xff]
    %v353 = vld [vmem:[#allocation5 + $0xe8] sm:$0xff]
    %v354 = vld [vmem:[#allocation5 + $0xf0] sm:$0xff]
    %v355 = vld [vmem:[#allocation5 + $0xf8] sm:$0xff]
    %v356 = vld [vmem:[#allocation5 + $0x120] sm:$0xff]
    %v357 = vld [vmem:[#allocation5 + $0x128] sm:$0xff]
    %v358 = vld [vmem:[#allocation5 + $0x130] sm:$0xff]
    %v359 = vld [vmem:[#allocation5 + $0x138] sm:$0xff]
    %v360 = vld [vmem:[#allocation5 + $0x160] sm:$0xff]
    %v361 = vld [vmem:[#allocation5 + $0x168] sm:$0xff]
    %v362 = vld [vmem:[#allocation5 + $0x170] sm:$0xff]
    %v363 = vld [vmem:[#allocation5 + $0x178] sm:$0xff]
    %v364 = vld [vmem:[#allocation5 + $0x1a0] sm:$0xff]
    %v365 = vld [vmem:[#allocation5 + $0x1a8] sm:$0xff]
    %v366 = vld [vmem:[#allocation5 + $0x1b0] sm:$0xff]
    %v367 = vld [vmem:[#allocation5 + $0x1b8] sm:$0xff]
    %v368 = vld [vmem:[#allocation5 + $0x1e0] sm:$0xff]
    %v369 = vld [vmem:[#allocation5 + $0x1e8] sm:$0xff]
    %v370 = vld [vmem:[#allocation5 + $0x1f0] sm:$0xff]
    %v371 = vld [vmem:[#allocation5 + $0x1f8] sm:$0xff]
    %v372 = vld [vmem:[#allocation5 + $0x220] sm:$0xff]
    %v373 = vld [vmem:[#allocation5 + $0x228] sm:$0xff]
    %v374 = vld [vmem:[#allocation5 + $0x230] sm:$0xff]
    %v375 = vld [vmem:[#allocation5 + $0x238] sm:$0xff]
    %v376 = vld [vmem:[#allocation5 + $0x260] sm:$0xff]
    %v377 = vld [vmem:[#allocation5 + $0x268] sm:$0xff]
    %v378 = vld [vmem:[#allocation5 + $0x270] sm:$0xff]
    %v379 = vld [vmem:[#allocation5 + $0x278] sm:$0xff]
    %v380 = vld [vmem:[#allocation5 + $0x2a0] sm:$0xff]
    %v381 = vld [vmem:[#allocation5 + $0x2a8] sm:$0xff]
    %v382 = vld [vmem:[#allocation5 + $0x2b0] sm:$0xff]
    %v383 = vld [vmem:[#allocation5 + $0x2b8] sm:$0xff]
    %v384 = vld [vmem:[#allocation5 + $0x2e0] sm:$0xff]
    %v385 = vld [vmem:[#allocation5 + $0x2e8] sm:$0xff]
    %v386 = vld [vmem:[#allocation5 + $0x2f0] sm:$0xff]
    %v387 = vld [vmem:[#allocation5 + $0x2f8] sm:$0xff]
    %v388 = vld [vmem:[#allocation5 + $0x320] sm:$0xff]
    %v389 = vld [vmem:[#allocation5 + $0x328] sm:$0xff]
    %v390 = vld [vmem:[#allocation5 + $0x330] sm:$0xff]
    %v391 = vld [vmem:[#allocation5 + $0x338] sm:$0xff]
    %v392 = vld [vmem:[#allocation5 + $0x360] sm:$0xff]
    %v393 = vld [vmem:[#allocation5 + $0x368] sm:$0xff]
    %v394 = vld [vmem:[#allocation5 + $0x370] sm:$0xff]
    %v395 = vld [vmem:[#allocation5 + $0x378] sm:$0xff]
    %v396 = vld [vmem:[#allocation5 + $0x3a0] sm:$0xff]
    %v397 = vld [vmem:[#allocation5 + $0x3a8] sm:$0xff]
    %v398 = vld [vmem:[#allocation5 + $0x3b0] sm:$0xff]
    %v399 = vld [vmem:[#allocation5 + $0x3b8] sm:$0xff]
    %v400 = vld [vmem:[#allocation5 + $0x3e0] sm:$0xff]
    %v401 = vld [vmem:[#allocation5 + $0x3e8] sm:$0xff]
    %v402 = vld [vmem:[#allocation5 + $0x3f0] sm:$0xff]
    %v403 = vld [vmem:[#allocation5 + $0x3f8] sm:$0xff]
    %v404 = vld [vmem:[#allocation5 + $0x420] sm:$0xff]
    %v405 = vld [vmem:[#allocation5 + $0x428] sm:$0xff]
    %v406 = vld [vmem:[#allocation5 + $0x430] sm:$0xff]
    %v407 = vld [vmem:[#allocation5 + $0x438] sm:$0xff]
    %v408 = vld [vmem:[#allocation5 + $0x460] sm:$0xff]
    %v409 = vld [vmem:[#allocation5 + $0x468] sm:$0xff]
    %v410 = vld [vmem:[#allocation5 + $0x470] sm:$0xff]
    %v411 = vld [vmem:[#allocation5 + $0x478] sm:$0xff]
    %v412 = vld [vmem:[#allocation5 + $0x4a0] sm:$0xff]
    %v413 = vld [vmem:[#allocation5 + $0x4a8] sm:$0xff]
    %v414 = vld [vmem:[#allocation5 + $0x4b0] sm:$0xff]
    %v415 = vld [vmem:[#allocation5 + $0x4b8] sm:$0xff]
    %v416 = vld [vmem:[#allocation5 + $0x4e0] sm:$0xff]
    %v417 = vld [vmem:[#allocation5 + $0x4e8] sm:$0xff]
    %v418 = vld [vmem:[#allocation5 + $0x4f0] sm:$0xff]
    %v419 = vld [vmem:[#allocation5 + $0x4f8] sm:$0xff]
    %v420 = vld [vmem:[#allocation5 + $0x520] sm:$0xff]
    %v421 = vld [vmem:[#allocation5 + $0x528] sm:$0xff]
    %v422 = vld [vmem:[#allocation5 + $0x530] sm:$0xff]
    %v423 = vld [vmem:[#allocation5 + $0x538] sm:$0xff]
    %v424 = vld [vmem:[#allocation5 + $0x560] sm:$0xff]
    %v425 = vld [vmem:[#allocation5 + $0x568] sm:$0xff]
    %v426 = vld [vmem:[#allocation5 + $0x570] sm:$0xff]
    %v427 = vld [vmem:[#allocation5 + $0x578] sm:$0xff]
    %v428 = vld [vmem:[#allocation5 + $0x5a0] sm:$0xff]
    %v429 = vld [vmem:[#allocation5 + $0x5a8] sm:$0xff]
    %v430 = vld [vmem:[#allocation5 + $0x5b0] sm:$0xff]
    %v431 = vld [vmem:[#allocation5 + $0x5b8] sm:$0xff]
    %v432 = vld [vmem:[#allocation5 + $0x5e0] sm:$0xff]
    %v433 = vld [vmem:[#allocation5 + $0x5e8] sm:$0xff]
    %v434 = vld [vmem:[#allocation5 + $0x5f0] sm:$0xff]
    %v435 = vld [vmem:[#allocation5 + $0x5f8] sm:$0xff]
    %v436 = vld [vmem:[#allocation5 + $0x620] sm:$0xff]
    %v437 = vld [vmem:[#allocation5 + $0x628] sm:$0xff]
    %v438 = vld [vmem:[#allocation5 + $0x630] sm:$0xff]
    %v439 = vld [vmem:[#allocation5 + $0x638] sm:$0xff]
    %v440 = vld [vmem:[#allocation5 + $0x660] sm:$0xff]
    %v441 = vld [vmem:[#allocation5 + $0x668] sm:$0xff]
    %v442 = vld [vmem:[#allocation5 + $0x670] sm:$0xff]
    %v443 = vld [vmem:[#allocation5 + $0x678] sm:$0xff]
    %v444 = vld [vmem:[#allocation5 + $0x6a0] sm:$0xff]
    %v445 = vld [vmem:[#allocation5 + $0x6a8] sm:$0xff]
    %v446 = vld [vmem:[#allocation5 + $0x6b0] sm:$0xff]
    %v447 = vld [vmem:[#allocation5 + $0x6b8] sm:$0xff]
    %v448 = vld [vmem:[#allocation5 + $0x6e0] sm:$0xff]
    %v449 = vld [vmem:[#allocation5 + $0x6e8] sm:$0xff]
    %v450 = vld [vmem:[#allocation5 + $0x6f0] sm:$0xff]
    %v451 = vld [vmem:[#allocation5 + $0x6f8] sm:$0xff]
    %v452 = vld [vmem:[#allocation5 + $0x720] sm:$0xff]
    %v453 = vld [vmem:[#allocation5 + $0x728] sm:$0xff]
    %v454 = vld [vmem:[#allocation5 + $0x730] sm:$0xff]
    %v455 = vld [vmem:[#allocation5 + $0x738] sm:$0xff]
    %v456 = vld [vmem:[#allocation5 + $0x760] sm:$0xff]
    %v457 = vld [vmem:[#allocation5 + $0x768] sm:$0xff]
    %v458 = vld [vmem:[#allocation5 + $0x770] sm:$0xff]
    %v459 = vld [vmem:[#allocation5 + $0x778] sm:$0xff]
    %v460 = vld [vmem:[#allocation5 + $0x7a0] sm:$0xff]
    %v461 = vld [vmem:[#allocation5 + $0x7a8] sm:$0xff]
    %v462 = vld [vmem:[#allocation5 + $0x7b0] sm:$0xff]
    %v463 = vld [vmem:[#allocation5 + $0x7b8] sm:$0xff]
    %v464 = vld [vmem:[#allocation5 + $0x7e0] sm:$0xff]
    %v465 = vld [vmem:[#allocation5 + $0x7e8] sm:$0xff]
    %v466 = vld [vmem:[#allocation5 + $0x7f0] sm:$0xff]
    %v467 = vld [vmem:[#allocation5 + $0x7f8] sm:$0xff]
    %v469 = vlaneseq
    %v470 = vshrl.u32 %v469, 7
    %v471 = vsub.s32 0, %v470
    %v472 = vrot.slane %v43, %v471
    %v473 = vlaneseq
    %v474 = vshrl.u32 %v473, 7
    %v475 = vsub.s32 1, %v474
    %v476 = vrot.slane %v43, %v475
    %v477 = vlaneseq
    %v478 = vshrl.u32 %v477, 7
    %v479 = vsub.s32 2, %v478
    %v480 = vrot.slane %v43, %v479
    %v481 = vlaneseq
    %v482 = vshrl.u32 %v481, 7
    %v483 = vsub.s32 3, %v482
    %v484 = vrot.slane %v43, %v483
    %489 = vmatprep.subr.mxu0 %v341
    %490 = vmatpush1.msra.mxu0 %v340
    %491 = vmatprep.subr.mxu0 %v345
    %492 = vmatpush1.msra.mxu0 %v344
    %493 = vmatprep.subr.mxu0 %v349
    %494 = vmatpush1.msra.mxu0 %v348
    %495 = vmatprep.subr.mxu0 %v353
    %496 = vmatpush1.msra.mxu0 %v352
    %497 = vmatprep.subr.mxu0 %v357
    %498 = vmatpush1.msra.mxu0 %v356
    %499 = vmatprep.subr.mxu0 %v361
    %500 = vmatpush1.msra.mxu0 %v360
    %501 = vmatprep.subr.mxu0 %v365
    %502 = vmatpush1.msra.mxu0 %v364
    %503 = vmatprep.subr.mxu0 %v369
    %504 = vmatpush1.msra.mxu0 %v368
    %505 = vmatprep.subr.mxu0 %v373
    %506 = vmatpush1.msra.mxu0 %v372
    %507 = vmatprep.subr.mxu0 %v377
    %508 = vmatpush1.msra.mxu0 %v376
    %509 = vmatprep.subr.mxu0 %v381
    %510 = vmatpush1.msra.mxu0 %v380
    %511 = vmatprep.subr.mxu0 %v385
    %512 = vmatpush1.msra.mxu0 %v384
    %513 = vmatprep.subr.mxu0 %v389
    %514 = vmatpush1.msra.mxu0 %v388
    %515 = vmatprep.subr.mxu0 %v393
    %516 = vmatpush1.msra.mxu0 %v392
    %517 = vmatprep.subr.mxu0 %v397
    %518 = vmatpush1.msra.mxu0 %v396
    %519 = vmatprep.subr.mxu0 %v401
    %520 = vmatpush1.msra.mxu0 %v400
    %521 = vmatprep.subr.mxu0 %v405
    %522 = vmatpush1.msra.mxu0 %v404
    %523 = vmatprep.subr.mxu0 %v409
    %524 = vmatpush1.msra.mxu0 %v408
    %525 = vmatprep.subr.mxu0 %v413
    %526 = vmatpush1.msra.mxu0 %v412
    %527 = vmatprep.subr.mxu0 %v417
    %528 = vmatpush1.msra.mxu0 %v416
    %529 = vmatprep.subr.mxu0 %v421
    %530 = vmatpush1.msra.mxu0 %v420
    %531 = vmatprep.subr.mxu0 %v425
    %532 = vmatpush1.msra.mxu0 %v424
    %533 = vmatprep.subr.mxu0 %v429
    %534 = vmatpush1.msra.mxu0 %v428
    %535 = vmatprep.subr.mxu0 %v433
    %536 = vmatpush1.msra.mxu0 %v432
    %537 = vmatprep.subr.mxu0 %v437
    %538 = vmatpush1.msra.mxu0 %v436
    %539 = vmatprep.subr.mxu0 %v441
    %540 = vmatpush1.msra.mxu0 %v440
    %541 = vmatprep.subr.mxu0 %v445
    %542 = vmatpush1.msra.mxu0 %v444
    %543 = vmatprep.subr.mxu0 %v449
    %544 = vmatpush1.msra.mxu0 %v448
    %545 = vmatprep.subr.mxu0 %v453
    %546 = vmatpush1.msra.mxu0 %v452
    %547 = vmatprep.subr.mxu0 %v457
    %548 = vmatpush1.msra.mxu0 %v456
    %549 = vmatprep.subr.mxu0 %v461
    %550 = vmatpush1.msra.mxu0 %v460
    %551 = vmatprep.subr.mxu0 %v465
    %552 = vmatpush1.msra.mxu0 %v464
    %553 = vmatprep.mubr.f32.mxu0 %v339
    %554 = vmatmul.mubr.f32.gmra.mrb[0].mxu0 %v338
    %v555 = vpop.f32.mrb[0].mxu0
    %v556 = vadd.f32 %v472, %v555
    %v557 = vpop.f32.mrb[0].mxu0
    %v558 = vadd.f32 %v476, %v557
    %559 = vdwg.mxu0
    %560 = vmatprep.subr.mxu0 %v343
    %561 = vmatpush1.msra.mxu0 %v342
    %562 = vmatprep.subr.mxu0 %v347
    %563 = vmatpush1.msra.mxu0 %v346
    %564 = vmatprep.subr.mxu0 %v351
    %565 = vmatpush1.msra.mxu0 %v350
    %566 = vmatprep.subr.mxu0 %v355
    %567 = vmatpush1.msra.mxu0 %v354
    %568 = vmatprep.subr.mxu0 %v359
    %569 = vmatpush1.msra.mxu0 %v358
    %570 = vmatprep.subr.mxu0 %v363
    %571 = vmatpush1.msra.mxu0 %v362
    %572 = vmatprep.subr.mxu0 %v367
    %573 = vmatpush1.msra.mxu0 %v366
    %574 = vmatprep.subr.mxu0 %v371
    %575 = vmatpush1.msra.mxu0 %v370
    %576 = vmatprep.subr.mxu0 %v375
    %577 = vmatpush1.msra.mxu0 %v374
    %578 = vmatprep.subr.mxu0 %v379
    %579 = vmatpush1.msra.mxu0 %v378
    %580 = vmatprep.subr.mxu0 %v383
    %581 = vmatpush1.msra.mxu0 %v382
    %582 = vmatprep.subr.mxu0 %v387
    %583 = vmatpush1.msra.mxu0 %v386
    %584 = vmatprep.subr.mxu0 %v391
    %585 = vmatpush1.msra.mxu0 %v390
    %586 = vmatprep.subr.mxu0 %v395
    %587 = vmatpush1.msra.mxu0 %v394
    %588 = vmatprep.subr.mxu0 %v399
    %589 = vmatpush1.msra.mxu0 %v398
    %590 = vmatprep.subr.mxu0 %v403
    %591 = vmatpush1.msra.mxu0 %v402
    %592 = vmatprep.subr.mxu0 %v407
    %593 = vmatpush1.msra.mxu0 %v406
    %594 = vmatprep.subr.mxu0 %v411
    %595 = vmatpush1.msra.mxu0 %v410
    %596 = vmatprep.subr.mxu0 %v415
    %597 = vmatpush1.msra.mxu0 %v414
    %598 = vmatprep.subr.mxu0 %v419
    %599 = vmatpush1.msra.mxu0 %v418
    %600 = vmatprep.subr.mxu0 %v423
    %601 = vmatpush1.msra.mxu0 %v422
    %602 = vmatprep.subr.mxu0 %v427
    %603 = vmatpush1.msra.mxu0 %v426
    %604 = vmatprep.subr.mxu0 %v431
    %605 = vmatpush1.msra.mxu0 %v430
    %606 = vmatprep.subr.mxu0 %v435
    %607 = vmatpush1.msra.mxu0 %v434
    %608 = vmatprep.subr.mxu0 %v439
    %609 = vmatpush1.msra.mxu0 %v438
    %610 = vmatprep.subr.mxu0 %v443
    %611 = vmatpush1.msra.mxu0 %v442
    %612 = vmatprep.subr.mxu0 %v447
    %613 = vmatpush1.msra.mxu0 %v446
    %614 = vmatprep.subr.mxu0 %v451
    %615 = vmatpush1.msra.mxu0 %v450
    %616 = vmatprep.subr.mxu0 %v455
    %617 = vmatpush1.msra.mxu0 %v454
    %618 = vmatprep.subr.mxu0 %v459
    %619 = vmatpush1.msra.mxu0 %v458
    %620 = vmatprep.subr.mxu0 %v463
    %621 = vmatpush1.msra.mxu0 %v462
    %622 = vmatprep.subr.mxu0 %v467
    %623 = vmatpush1.msra.mxu0 %v466
    %624 = vmatprep.mubr.f32.mxu0 %v339
    %625 = vmatmul.mubr.f32.gmra.mrb[0].mxu0 %v338
    %v626 = vpop.f32.mrb[0].mxu0
    %v627 = vadd.f32 %v480, %v626
    %v628 = vpop.f32.mrb[0].mxu0
    %v629 = vadd.f32 %v484, %v628
    %630 = vdwg.mxu0
    %v635 = vcombine.low %v556, %v558
    %v636 = vcombine.low %v627, %v629
    %v638 = vunpack.c.l.s4 1983009808
    %v639 = vunpack.c.0.s8 %v638
    %v640 = vlaneseq
    %v641 = vshrl.u32 %v640, 7
    %v642 = vsub.s32 %v639, %v641
    %v643 = vrot.slane %v635, %v642
    %v645 = vunpack.c.l.s4 1983009808
    %v646 = vunpack.c.0.s8 %v645
    %v647 = vlaneseq
    %v648 = vshrl.u32 %v647, 7
    %v649 = vsub.s32 %v646, %v648
    %v650 = vrot.slane %v636, %v649
    %v651 = vcombine.low %v643, %v650
    %653 = vst [vmem:[#allocation7] sm:$0xff] %v651
    // Predicated region
    $region22: #{tpu_custom_call.1} parent=1 // pred_check
      _
    $region23: #{tpu_custom_call.1} parent=1 // pred_check_branch
      %655 = sbr.rel (0) target = $region25
    $region24: #{tpu_custom_call.1} parent=1 // pred_region
      %s657 = ssub.s32 128, 128
      %658 = vsyncadd [#allocation4], %s657
      %s660 = sshll.u32 [#allocation7], 4
      %s661 = int_to_ptr.vmem [resolvable:$true] %s660
      %663 = dma.vmem_to_hbm [thread:$0]  %s661, 128, %s3, [#allocation4]
    $region25: #{tpu_custom_call.1} parent=1 // pred_fallthru
      _
    // Predicated region
    $region26: #{tpu_custom_call.1} parent=1 // pred_check
      _
    $region27: #{tpu_custom_call.1} parent=1 // pred_check_branch
      %665 = sbr.rel (0) target = $region29
    $region28: #{tpu_custom_call.1} parent=1 // pred_region
      %666 = dma.done [#allocation4], 128
    $region29: #{tpu_custom_call.1} parent=1 // pred_fallthru
      _
    %667 = vsyncpa [#allocation3], 1
    %668 = vsyncpa [#allocation6], 1
    %669 = vsyncpa [#allocation4], 1

</llo_original>
